<compile_context>
chip_gen: v7x
topology: tpu7x:2x2x1
jax: 0.10.0
libtpu: 0.0.40
codegen_flags: <defaults>
</compile_context>

<pallas_src>
import functools

import jax
import jax.numpy as jnp
from jax.experimental import pallas as pl
from jax.experimental.pallas import tpu as pltpu


def _dyn_attention_head_kernel(r_ref, w1b2_ref, w2m_ref, wct_ref, bias_ref,
                               o_ref, *, H, Vp, chunk_k):
    f32 = jnp.float32
    bf16 = jnp.bfloat16

    r = r_ref[...]                                      # (TB, R) f32
    r_b = r.astype(bf16)                                # single cast, reused

    # Fused: generate[0] Linear(R->H) and the folded b2 bias term (both share
    # LHS r).  w1b2 = [W1^T | B2t] with B2t[r,hh] = b2[hh*R+r].
    hcat = jnp.dot(r_b, w1b2_ref[...], preferred_element_type=f32)   # (TB, 2H)
    b1 = bias_ref[:, Vp:Vp + H]                                       # (1, H)
    h = jnp.maximum(hcat[:, :H] + b1, 0.0)                            # (TB, H) f32
    out = hcat[:, H:]                                                 # (TB, H) = r @ B2t

    # Main contraction, selector-free:
    #   v[b, k*H+hh] = sum_r r[b,r] * W2[hh*R+r, k]       (one lane-dense matmul)
    #   out[b, hh]  += sum_k h[b,k] * v[b, k*H+hh]         (f32 VPU, unrolled)
    # Chunked over k so each (TB, chunk_k*H) piece is consumed immediately.
    n_chunks = H // chunk_k
    for c in range(n_chunks):
        k0 = c * chunk_k
        w2c = w2m_ref[:, k0 * H:(k0 + chunk_k) * H]                   # (R, chunk_k*H) bf16
        v = jnp.dot(r_b, w2c, preferred_element_type=f32)             # (TB, chunk_k*H) f32
        for j in range(chunk_k):
            k = k0 + j
            out = out + h[:, k:k + 1] * v[:, j * H:(j + 1) * H]

    # classifier Linear(H -> V) into a lane-dense (Vp multiple of 128) output.
    bc = bias_ref[:, :Vp]
    o_ref[...] = jnp.dot(out.astype(bf16), wct_ref[...],
                         preferred_element_type=f32) + bc


def _round_up(x, m):
    return ((x + m - 1) // m) * m


def dyn_attention_head(r_state, w1, b1, w2, b2, wc, bc):
    """r_state: (B, R). Weights follow PyTorch nn.Linear convention (out, in)."""
    B, R = r_state.shape
    H = w1.shape[0]
    V = wc.shape[0]
    HR = H * R
    assert w1.shape == (H, R)
    assert w2.shape == (HR, H)
    assert b2.shape == (HR,)
    assert wc.shape == (V, H)

    LANE, SUB = 128, 8
    f32, bf16 = jnp.float32, jnp.bfloat16

    # Lane-dense classifier output: pad V up to a multiple of 128 lanes.
    Vp = _round_up(V, LANE)

    # Batch tiling: tiny B -> one padded block; otherwise >= 2 blocks (v7x
    # megacore via "parallel") with up to 256 rows (v6e/v7x 256-wide MXU).
    if B <= 16:
        TB = _round_up(B, SUB)
    else:
        TB = min(256, _round_up((B + 1) // 2, SUB))
    Bp = _round_up(B, TB)
    grid = (Bp // TB,)

    # ---- wrapper-side operand prep (plain XLA glue, outside the kernel) ----
    r_p = jnp.zeros((Bp, R), f32).at[:B, :].set(r_state.astype(f32))

    # Fused (R, 2H): [W1^T | B2t], B2t[r, hh] = b2[hh*R + r].
    w1t = jnp.transpose(w1).astype(f32)                       # (R, H)
    b2t = jnp.transpose(b2.reshape(H, R)).astype(f32)         # (R, H)
    w1b2 = jnp.concatenate([w1t, b2t], axis=1).astype(bf16)   # (R, 2H)

    # Permuted W2 for the selector-free contraction:
    #   w2m[r, k*H + hh] = W2[hh*R + r, k]     (dominant DMA, bf16)
    w2m = jnp.transpose(w2.reshape(H, R, H), (1, 2, 0)).reshape(R, H * H)
    w2m = w2m.astype(bf16)

    # Classifier weight, lane padded.  Biases packed into one operand:
    #   [ bc (Vp lanes, aligned) | b1 (H lanes at offset Vp) ]
    wct = jnp.zeros((H, Vp), bf16).at[:, :V].set(jnp.transpose(wc).astype(bf16))
    bias = jnp.zeros((1, Vp + H), f32)
    bias = bias.at[:, :V].set(bc.astype(f32).reshape(1, V))
    bias = bias.at[:, Vp:Vp + H].set(b1.astype(f32).reshape(1, H))

    # ~512-lane matmul chunks over the hidden index k (chunk_k divides H).
    chunk_k = max(1, min(H, 512 // H))
    while H % chunk_k:
        chunk_k -= 1

    kernel = functools.partial(_dyn_attention_head_kernel,
                               H=H, Vp=Vp, chunk_k=chunk_k)

    out = pl.pallas_call(
        kernel,
        out_shape=jax.ShapeDtypeStruct((Bp, Vp), f32),
        grid=grid,
        in_specs=[
            pl.BlockSpec((TB, R), lambda i: (i, 0)),        # r_state (batch block)
            pl.BlockSpec((R, 2 * H), lambda i: (0, 0)),     # [W1^T | B2t]  bf16
            pl.BlockSpec((R, H * H), lambda i: (0, 0)),     # permuted W2   bf16
            pl.BlockSpec((H, Vp), lambda i: (0, 0)),        # Wc^T (lane padded)
            pl.BlockSpec((1, Vp + H), lambda i: (0, 0)),    # [bc | b1]
        ],
        out_specs=pl.BlockSpec((TB, Vp), lambda i: (i, 0)),
        compiler_params=pltpu.CompilerParams(
            dimension_semantics=("parallel",)),
    )(r_p, w1b2, w2m, wct, bias)

    return out[:B, :V]


def _reference(r_state, w1, b1, w2, b2, wc, bc):
    """Plain-JAX mirror of the PyTorch forward, for correctness checking."""
    B, R = r_state.shape
    H = w1.shape[0]
    h = jnp.maximum(r_state @ w1.T + b1, 0.0)
    W = (h @ w2.T + b2).reshape(B, H, R)
    out = jnp.einsum("bhr,br->bh", W, r_state)
    return out @ wc.T + bc


if __name__ == "__main__":
    reservoir_size = 32   # R
    hidden_size = 32      # H
    vocab_size = 16       # V

    key = jax.random.PRNGKey(0)
    ks = jax.random.split(key, 7)

    # Deterministic synthetic parameters (PyTorch nn.Linear shapes: (out, in)).
    w1 = jax.random.normal(ks[0], (hidden_size, reservoir_size), jnp.float32) * 0.1
    b1 = jax.random.normal(ks[1], (hidden_size,), jnp.float32) * 0.1
    w2 = jax.random.normal(ks[2], (hidden_size * reservoir_size, hidden_size),
                           jnp.float32) * 0.1
    b2 = jax.random.normal(ks[3], (hidden_size * reservoir_size,), jnp.float32) * 0.1
    wc = jax.random.normal(ks[4], (vocab_size, hidden_size), jnp.float32) * 0.1
    bc = jax.random.normal(ks[5], (vocab_size,), jnp.float32) * 0.1

    fwd = jax.jit(dyn_attention_head)

    # B=2 exercises the single-block path; B=130 exercises the multi-block
    # "parallel" grid (grid=(2,)) and padded-row slicing (review concern).
    for B in (2, 130):
        r_state = jax.random.normal(jax.random.fold_in(ks[6], B),
                                    (B, reservoir_size), jnp.float32)
        logits = jax.block_until_ready(fwd(r_state, w1, b1, w2, b2, wc, bc))
        ref = _reference(r_state, w1, b1, w2, b2, wc, bc)
        assert logits.shape == (B, vocab_size)
        max_err = float(jnp.max(jnp.abs(logits - ref)))
        # bf16 weights into the MXU (f32 accumulation) -> loose tolerance.
        assert jnp.allclose(logits, ref, atol=5e-2, rtol=5e-2), \
            f"B={B}: max abs err {max_err}"

    print("KERNEL_OK")
</pallas_src>

<mosaic_0001>
module attributes {stable_mosaic.version = 11 : i64} {
  func.func @_dyn_attention_head_kernel(%arg0: i32, %arg1: memref<8x32xf32, #tpu.memory_space<vmem>>, %arg2: memref<32x64xbf16, #tpu.memory_space<vmem>>, %arg3: memref<32x1024xbf16, #tpu.memory_space<vmem>>, %arg4: memref<32x128xbf16, #tpu.memory_space<vmem>>, %arg5: memref<1x160xf32, #tpu.memory_space<vmem>>, %arg6: memref<8x128xf32, #tpu.memory_space<vmem>>) attributes {dimension_semantics = [#tpu.dimension_semantics<parallel>], iteration_bounds = array<i64: 1>, scalar_prefetch = 0 : i64, scratch_operands = 0 : i64, tpu.core_type = #tpu.core_type<tc>, window_params = [{transform_indices = @transform_0, window_bounds = array<i64: 8, 32>}, {pipeline_mode = #tpu.pipeline_mode<synchronous>, transform_indices = @transform_1, window_bounds = array<i64: 32, 64>}, {pipeline_mode = #tpu.pipeline_mode<synchronous>, transform_indices = @transform_2, window_bounds = array<i64: 32, 1024>}, {pipeline_mode = #tpu.pipeline_mode<synchronous>, transform_indices = @transform_3, window_bounds = array<i64: 32, 128>}, {pipeline_mode = #tpu.pipeline_mode<synchronous>, transform_indices = @transform_4, window_bounds = array<i64: 1, 160>}, {transform_indices = @transform_5, window_bounds = array<i64: 8, 128>}]} {
    %c0 = arith.constant 0 : index
    %c0_0 = arith.constant 0 : index
    %0 = vector.load %arg1[%c0, %c0_0] : memref<8x32xf32, #tpu.memory_space<vmem>>, vector<8x32xf32>
    %1 = arith.truncf %0 : vector<8x32xf32> to vector<8x32xbf16>
    %c0_1 = arith.constant 0 : index
    %c0_2 = arith.constant 0 : index
    %2 = vector.load %arg2[%c0_1, %c0_2] : memref<32x64xbf16, #tpu.memory_space<vmem>>, vector<32x64xbf16>
    %cst = arith.constant dense<0.000000e+00> : vector<8x64xf32>
    %3 = tpu.matmul %1, %2, %cst {dimension_numbers = #tpu.dot_dimension_numbers<[1], [0], [0], [1], [0, 0, 1, 1], [], []>} : vector<8x32xbf16>, vector<32x64xbf16>, vector<8x64xf32> -> vector<8x64xf32>
    %c0_3 = arith.constant 0 : index
    %c128 = arith.constant 128 : index
    %4 = vector.load %arg5[%c0_3, %c128] : memref<1x160xf32, #tpu.memory_space<vmem>>, vector<1x32xf32>
    %5 = vector.extract_strided_slice %3 {offsets = [0, 0], sizes = [8, 32], strides = [1, 1]} : vector<8x64xf32> to vector<8x32xf32>
    %6 = vector.broadcast %4 : vector<1x32xf32> to vector<8x32xf32>
    %7 = arith.addf %5, %6 : vector<8x32xf32>
    %cst_4 = arith.constant 0.000000e+00 : f32
    %8 = vector.broadcast %cst_4 : f32 to vector<8x32xf32>
    %9 = arith.maximumf %7, %8 : vector<8x32xf32>
    %10 = vector.extract_strided_slice %3 {offsets = [0, 32], sizes = [8, 32], strides = [1, 1]} : vector<8x64xf32> to vector<8x32xf32>
    %c0_5 = arith.constant 0 : index
    %c0_6 = arith.constant 0 : index
    %11 = vector.load %arg3[%c0_5, %c0_6] : memref<32x1024xbf16, #tpu.memory_space<vmem>>, vector<32x512xbf16>
    %cst_7 = arith.constant dense<0.000000e+00> : vector<8x512xf32>
    %12 = tpu.matmul %1, %11, %cst_7 {dimension_numbers = #tpu.dot_dimension_numbers<[1], [0], [0], [1], [0, 0, 1, 1], [], []>} : vector<8x32xbf16>, vector<32x512xbf16>, vector<8x512xf32> -> vector<8x512xf32>
    %13 = vector.extract_strided_slice %9 {offsets = [0, 0], sizes = [8, 1], strides = [1, 1]} : vector<8x32xf32> to vector<8x1xf32>
    %14 = vector.extract_strided_slice %12 {offsets = [0, 0], sizes = [8, 32], strides = [1, 1]} : vector<8x512xf32> to vector<8x32xf32>
    %15 = vector.broadcast %13 : vector<8x1xf32> to vector<8x32xf32>
    %16 = arith.mulf %15, %14 : vector<8x32xf32>
    %17 = arith.addf %10, %16 : vector<8x32xf32>
    %18 = vector.extract_strided_slice %9 {offsets = [0, 1], sizes = [8, 1], strides = [1, 1]} : vector<8x32xf32> to vector<8x1xf32>
    %19 = vector.extract_strided_slice %12 {offsets = [0, 32], sizes = [8, 32], strides = [1, 1]} : vector<8x512xf32> to vector<8x32xf32>
    %20 = vector.broadcast %18 : vector<8x1xf32> to vector<8x32xf32>
    %21 = arith.mulf %20, %19 : vector<8x32xf32>
    %22 = arith.addf %17, %21 : vector<8x32xf32>
    %23 = vector.extract_strided_slice %9 {offsets = [0, 2], sizes = [8, 1], strides = [1, 1]} : vector<8x32xf32> to vector<8x1xf32>
    %24 = vector.extract_strided_slice %12 {offsets = [0, 64], sizes = [8, 32], strides = [1, 1]} : vector<8x512xf32> to vector<8x32xf32>
    %25 = vector.broadcast %23 : vector<8x1xf32> to vector<8x32xf32>
    %26 = arith.mulf %25, %24 : vector<8x32xf32>
    %27 = arith.addf %22, %26 : vector<8x32xf32>
    %28 = vector.extract_strided_slice %9 {offsets = [0, 3], sizes = [8, 1], strides = [1, 1]} : vector<8x32xf32> to vector<8x1xf32>
    %29 = vector.extract_strided_slice %12 {offsets = [0, 96], sizes = [8, 32], strides = [1, 1]} : vector<8x512xf32> to vector<8x32xf32>
    %30 = vector.broadcast %28 : vector<8x1xf32> to vector<8x32xf32>
    %31 = arith.mulf %30, %29 : vector<8x32xf32>
    %32 = arith.addf %27, %31 : vector<8x32xf32>
    %33 = vector.extract_strided_slice %9 {offsets = [0, 4], sizes = [8, 1], strides = [1, 1]} : vector<8x32xf32> to vector<8x1xf32>
    %34 = vector.extract_strided_slice %12 {offsets = [0, 128], sizes = [8, 32], strides = [1, 1]} : vector<8x512xf32> to vector<8x32xf32>
    %35 = vector.broadcast %33 : vector<8x1xf32> to vector<8x32xf32>
    %36 = arith.mulf %35, %34 : vector<8x32xf32>
    %37 = arith.addf %32, %36 : vector<8x32xf32>
    %38 = vector.extract_strided_slice %9 {offsets = [0, 5], sizes = [8, 1], strides = [1, 1]} : vector<8x32xf32> to vector<8x1xf32>
    %39 = vector.extract_strided_slice %12 {offsets = [0, 160], sizes = [8, 32], strides = [1, 1]} : vector<8x512xf32> to vector<8x32xf32>
    %40 = vector.broadcast %38 : vector<8x1xf32> to vector<8x32xf32>
    %41 = arith.mulf %40, %39 : vector<8x32xf32>
    %42 = arith.addf %37, %41 : vector<8x32xf32>
    %43 = vector.extract_strided_slice %9 {offsets = [0, 6], sizes = [8, 1], strides = [1, 1]} : vector<8x32xf32> to vector<8x1xf32>
    %44 = vector.extract_strided_slice %12 {offsets = [0, 192], sizes = [8, 32], strides = [1, 1]} : vector<8x512xf32> to vector<8x32xf32>
    %45 = vector.broadcast %43 : vector<8x1xf32> to vector<8x32xf32>
    %46 = arith.mulf %45, %44 : vector<8x32xf32>
    %47 = arith.addf %42, %46 : vector<8x32xf32>
    %48 = vector.extract_strided_slice %9 {offsets = [0, 7], sizes = [8, 1], strides = [1, 1]} : vector<8x32xf32> to vector<8x1xf32>
    %49 = vector.extract_strided_slice %12 {offsets = [0, 224], sizes = [8, 32], strides = [1, 1]} : vector<8x512xf32> to vector<8x32xf32>
    %50 = vector.broadcast %48 : vector<8x1xf32> to vector<8x32xf32>
    %51 = arith.mulf %50, %49 : vector<8x32xf32>
    %52 = arith.addf %47, %51 : vector<8x32xf32>
    %53 = vector.extract_strided_slice %9 {offsets = [0, 8], sizes = [8, 1], strides = [1, 1]} : vector<8x32xf32> to vector<8x1xf32>
    %54 = vector.extract_strided_slice %12 {offsets = [0, 256], sizes = [8, 32], strides = [1, 1]} : vector<8x512xf32> to vector<8x32xf32>
    %55 = vector.broadcast %53 : vector<8x1xf32> to vector<8x32xf32>
    %56 = arith.mulf %55, %54 : vector<8x32xf32>
    %57 = arith.addf %52, %56 : vector<8x32xf32>
    %58 = vector.extract_strided_slice %9 {offsets = [0, 9], sizes = [8, 1], strides = [1, 1]} : vector<8x32xf32> to vector<8x1xf32>
    %59 = vector.extract_strided_slice %12 {offsets = [0, 288], sizes = [8, 32], strides = [1, 1]} : vector<8x512xf32> to vector<8x32xf32>
    %60 = vector.broadcast %58 : vector<8x1xf32> to vector<8x32xf32>
    %61 = arith.mulf %60, %59 : vector<8x32xf32>
    %62 = arith.addf %57, %61 : vector<8x32xf32>
    %63 = vector.extract_strided_slice %9 {offsets = [0, 10], sizes = [8, 1], strides = [1, 1]} : vector<8x32xf32> to vector<8x1xf32>
    %64 = vector.extract_strided_slice %12 {offsets = [0, 320], sizes = [8, 32], strides = [1, 1]} : vector<8x512xf32> to vector<8x32xf32>
    %65 = vector.broadcast %63 : vector<8x1xf32> to vector<8x32xf32>
    %66 = arith.mulf %65, %64 : vector<8x32xf32>
    %67 = arith.addf %62, %66 : vector<8x32xf32>
    %68 = vector.extract_strided_slice %9 {offsets = [0, 11], sizes = [8, 1], strides = [1, 1]} : vector<8x32xf32> to vector<8x1xf32>
    %69 = vector.extract_strided_slice %12 {offsets = [0, 352], sizes = [8, 32], strides = [1, 1]} : vector<8x512xf32> to vector<8x32xf32>
    %70 = vector.broadcast %68 : vector<8x1xf32> to vector<8x32xf32>
    %71 = arith.mulf %70, %69 : vector<8x32xf32>
    %72 = arith.addf %67, %71 : vector<8x32xf32>
    %73 = vector.extract_strided_slice %9 {offsets = [0, 12], sizes = [8, 1], strides = [1, 1]} : vector<8x32xf32> to vector<8x1xf32>
    %74 = vector.extract_strided_slice %12 {offsets = [0, 384], sizes = [8, 32], strides = [1, 1]} : vector<8x512xf32> to vector<8x32xf32>
    %75 = vector.broadcast %73 : vector<8x1xf32> to vector<8x32xf32>
    %76 = arith.mulf %75, %74 : vector<8x32xf32>
    %77 = arith.addf %72, %76 : vector<8x32xf32>
    %78 = vector.extract_strided_slice %9 {offsets = [0, 13], sizes = [8, 1], strides = [1, 1]} : vector<8x32xf32> to vector<8x1xf32>
    %79 = vector.extract_strided_slice %12 {offsets = [0, 416], sizes = [8, 32], strides = [1, 1]} : vector<8x512xf32> to vector<8x32xf32>
    %80 = vector.broadcast %78 : vector<8x1xf32> to vector<8x32xf32>
    %81 = arith.mulf %80, %79 : vector<8x32xf32>
    %82 = arith.addf %77, %81 : vector<8x32xf32>
    %83 = vector.extract_strided_slice %9 {offsets = [0, 14], sizes = [8, 1], strides = [1, 1]} : vector<8x32xf32> to vector<8x1xf32>
    %84 = vector.extract_strided_slice %12 {offsets = [0, 448], sizes = [8, 32], strides = [1, 1]} : vector<8x512xf32> to vector<8x32xf32>
    %85 = vector.broadcast %83 : vector<8x1xf32> to vector<8x32xf32>
    %86 = arith.mulf %85, %84 : vector<8x32xf32>
    %87 = arith.addf %82, %86 : vector<8x32xf32>
    %88 = vector.extract_strided_slice %9 {offsets = [0, 15], sizes = [8, 1], strides = [1, 1]} : vector<8x32xf32> to vector<8x1xf32>
    %89 = vector.extract_strided_slice %12 {offsets = [0, 480], sizes = [8, 32], strides = [1, 1]} : vector<8x512xf32> to vector<8x32xf32>
    %90 = vector.broadcast %88 : vector<8x1xf32> to vector<8x32xf32>
    %91 = arith.mulf %90, %89 : vector<8x32xf32>
    %92 = arith.addf %87, %91 : vector<8x32xf32>
    %c0_8 = arith.constant 0 : index
    %c512 = arith.constant 512 : index
    %93 = vector.load %arg3[%c0_8, %c512] : memref<32x1024xbf16, #tpu.memory_space<vmem>>, vector<32x512xbf16>
    %cst_9 = arith.constant dense<0.000000e+00> : vector<8x512xf32>
    %94 = tpu.matmul %1, %93, %cst_9 {dimension_numbers = #tpu.dot_dimension_numbers<[1], [0], [0], [1], [0, 0, 1, 1], [], []>} : vector<8x32xbf16>, vector<32x512xbf16>, vector<8x512xf32> -> vector<8x512xf32>
    %95 = vector.extract_strided_slice %9 {offsets = [0, 16], sizes = [8, 1], strides = [1, 1]} : vector<8x32xf32> to vector<8x1xf32>
    %96 = vector.extract_strided_slice %94 {offsets = [0, 0], sizes = [8, 32], strides = [1, 1]} : vector<8x512xf32> to vector<8x32xf32>
    %97 = vector.broadcast %95 : vector<8x1xf32> to vector<8x32xf32>
    %98 = arith.mulf %97, %96 : vector<8x32xf32>
    %99 = arith.addf %92, %98 : vector<8x32xf32>
    %100 = vector.extract_strided_slice %9 {offsets = [0, 17], sizes = [8, 1], strides = [1, 1]} : vector<8x32xf32> to vector<8x1xf32>
    %101 = vector.extract_strided_slice %94 {offsets = [0, 32], sizes = [8, 32], strides = [1, 1]} : vector<8x512xf32> to vector<8x32xf32>
    %102 = vector.broadcast %100 : vector<8x1xf32> to vector<8x32xf32>
    %103 = arith.mulf %102, %101 : vector<8x32xf32>
    %104 = arith.addf %99, %103 : vector<8x32xf32>
    %105 = vector.extract_strided_slice %9 {offsets = [0, 18], sizes = [8, 1], strides = [1, 1]} : vector<8x32xf32> to vector<8x1xf32>
    %106 = vector.extract_strided_slice %94 {offsets = [0, 64], sizes = [8, 32], strides = [1, 1]} : vector<8x512xf32> to vector<8x32xf32>
    %107 = vector.broadcast %105 : vector<8x1xf32> to vector<8x32xf32>
    %108 = arith.mulf %107, %106 : vector<8x32xf32>
    %109 = arith.addf %104, %108 : vector<8x32xf32>
    %110 = vector.extract_strided_slice %9 {offsets = [0, 19], sizes = [8, 1], strides = [1, 1]} : vector<8x32xf32> to vector<8x1xf32>
    %111 = vector.extract_strided_slice %94 {offsets = [0, 96], sizes = [8, 32], strides = [1, 1]} : vector<8x512xf32> to vector<8x32xf32>
    %112 = vector.broadcast %110 : vector<8x1xf32> to vector<8x32xf32>
    %113 = arith.mulf %112, %111 : vector<8x32xf32>
    %114 = arith.addf %109, %113 : vector<8x32xf32>
    %115 = vector.extract_strided_slice %9 {offsets = [0, 20], sizes = [8, 1], strides = [1, 1]} : vector<8x32xf32> to vector<8x1xf32>
    %116 = vector.extract_strided_slice %94 {offsets = [0, 128], sizes = [8, 32], strides = [1, 1]} : vector<8x512xf32> to vector<8x32xf32>
    %117 = vector.broadcast %115 : vector<8x1xf32> to vector<8x32xf32>
    %118 = arith.mulf %117, %116 : vector<8x32xf32>
    %119 = arith.addf %114, %118 : vector<8x32xf32>
    %120 = vector.extract_strided_slice %9 {offsets = [0, 21], sizes = [8, 1], strides = [1, 1]} : vector<8x32xf32> to vector<8x1xf32>
    %121 = vector.extract_strided_slice %94 {offsets = [0, 160], sizes = [8, 32], strides = [1, 1]} : vector<8x512xf32> to vector<8x32xf32>
    %122 = vector.broadcast %120 : vector<8x1xf32> to vector<8x32xf32>
    %123 = arith.mulf %122, %121 : vector<8x32xf32>
    %124 = arith.addf %119, %123 : vector<8x32xf32>
    %125 = vector.extract_strided_slice %9 {offsets = [0, 22], sizes = [8, 1], strides = [1, 1]} : vector<8x32xf32> to vector<8x1xf32>
    %126 = vector.extract_strided_slice %94 {offsets = [0, 192], sizes = [8, 32], strides = [1, 1]} : vector<8x512xf32> to vector<8x32xf32>
    %127 = vector.broadcast %125 : vector<8x1xf32> to vector<8x32xf32>
    %128 = arith.mulf %127, %126 : vector<8x32xf32>
    %129 = arith.addf %124, %128 : vector<8x32xf32>
    %130 = vector.extract_strided_slice %9 {offsets = [0, 23], sizes = [8, 1], strides = [1, 1]} : vector<8x32xf32> to vector<8x1xf32>
    %131 = vector.extract_strided_slice %94 {offsets = [0, 224], sizes = [8, 32], strides = [1, 1]} : vector<8x512xf32> to vector<8x32xf32>
    %132 = vector.broadcast %130 : vector<8x1xf32> to vector<8x32xf32>
    %133 = arith.mulf %132, %131 : vector<8x32xf32>
    %134 = arith.addf %129, %133 : vector<8x32xf32>
    %135 = vector.extract_strided_slice %9 {offsets = [0, 24], sizes = [8, 1], strides = [1, 1]} : vector<8x32xf32> to vector<8x1xf32>
    %136 = vector.extract_strided_slice %94 {offsets = [0, 256], sizes = [8, 32], strides = [1, 1]} : vector<8x512xf32> to vector<8x32xf32>
    %137 = vector.broadcast %135 : vector<8x1xf32> to vector<8x32xf32>
    %138 = arith.mulf %137, %136 : vector<8x32xf32>
    %139 = arith.addf %134, %138 : vector<8x32xf32>
    %140 = vector.extract_strided_slice %9 {offsets = [0, 25], sizes = [8, 1], strides = [1, 1]} : vector<8x32xf32> to vector<8x1xf32>
    %141 = vector.extract_strided_slice %94 {offsets = [0, 288], sizes = [8, 32], strides = [1, 1]} : vector<8x512xf32> to vector<8x32xf32>
    %142 = vector.broadcast %140 : vector<8x1xf32> to vector<8x32xf32>
    %143 = arith.mulf %142, %141 : vector<8x32xf32>
    %144 = arith.addf %139, %143 : vector<8x32xf32>
    %145 = vector.extract_strided_slice %9 {offsets = [0, 26], sizes = [8, 1], strides = [1, 1]} : vector<8x32xf32> to vector<8x1xf32>
    %146 = vector.extract_strided_slice %94 {offsets = [0, 320], sizes = [8, 32], strides = [1, 1]} : vector<8x512xf32> to vector<8x32xf32>
    %147 = vector.broadcast %145 : vector<8x1xf32> to vector<8x32xf32>
    %148 = arith.mulf %147, %146 : vector<8x32xf32>
    %149 = arith.addf %144, %148 : vector<8x32xf32>
    %150 = vector.extract_strided_slice %9 {offsets = [0, 27], sizes = [8, 1], strides = [1, 1]} : vector<8x32xf32> to vector<8x1xf32>
    %151 = vector.extract_strided_slice %94 {offsets = [0, 352], sizes = [8, 32], strides = [1, 1]} : vector<8x512xf32> to vector<8x32xf32>
    %152 = vector.broadcast %150 : vector<8x1xf32> to vector<8x32xf32>
    %153 = arith.mulf %152, %151 : vector<8x32xf32>
    %154 = arith.addf %149, %153 : vector<8x32xf32>
    %155 = vector.extract_strided_slice %9 {offsets = [0, 28], sizes = [8, 1], strides = [1, 1]} : vector<8x32xf32> to vector<8x1xf32>
    %156 = vector.extract_strided_slice %94 {offsets = [0, 384], sizes = [8, 32], strides = [1, 1]} : vector<8x512xf32> to vector<8x32xf32>
    %157 = vector.broadcast %155 : vector<8x1xf32> to vector<8x32xf32>
    %158 = arith.mulf %157, %156 : vector<8x32xf32>
    %159 = arith.addf %154, %158 : vector<8x32xf32>
    %160 = vector.extract_strided_slice %9 {offsets = [0, 29], sizes = [8, 1], strides = [1, 1]} : vector<8x32xf32> to vector<8x1xf32>
    %161 = vector.extract_strided_slice %94 {offsets = [0, 416], sizes = [8, 32], strides = [1, 1]} : vector<8x512xf32> to vector<8x32xf32>
    %162 = vector.broadcast %160 : vector<8x1xf32> to vector<8x32xf32>
    %163 = arith.mulf %162, %161 : vector<8x32xf32>
    %164 = arith.addf %159, %163 : vector<8x32xf32>
    %165 = vector.extract_strided_slice %9 {offsets = [0, 30], sizes = [8, 1], strides = [1, 1]} : vector<8x32xf32> to vector<8x1xf32>
    %166 = vector.extract_strided_slice %94 {offsets = [0, 448], sizes = [8, 32], strides = [1, 1]} : vector<8x512xf32> to vector<8x32xf32>
    %167 = vector.broadcast %165 : vector<8x1xf32> to vector<8x32xf32>
    %168 = arith.mulf %167, %166 : vector<8x32xf32>
    %169 = arith.addf %164, %168 : vector<8x32xf32>
    %170 = vector.extract_strided_slice %9 {offsets = [0, 31], sizes = [8, 1], strides = [1, 1]} : vector<8x32xf32> to vector<8x1xf32>
    %171 = vector.extract_strided_slice %94 {offsets = [0, 480], sizes = [8, 32], strides = [1, 1]} : vector<8x512xf32> to vector<8x32xf32>
    %172 = vector.broadcast %170 : vector<8x1xf32> to vector<8x32xf32>
    %173 = arith.mulf %172, %171 : vector<8x32xf32>
    %174 = arith.addf %169, %173 : vector<8x32xf32>
    %c0_10 = arith.constant 0 : index
    %c0_11 = arith.constant 0 : index
    %175 = vector.load %arg5[%c0_10, %c0_11] : memref<1x160xf32, #tpu.memory_space<vmem>>, vector<1x128xf32>
    %176 = arith.truncf %174 : vector<8x32xf32> to vector<8x32xbf16>
    %c0_12 = arith.constant 0 : index
    %c0_13 = arith.constant 0 : index
    %177 = vector.load %arg4[%c0_12, %c0_13] : memref<32x128xbf16, #tpu.memory_space<vmem>>, vector<32x128xbf16>
    %cst_14 = arith.constant dense<0.000000e+00> : vector<8x128xf32>
    %178 = tpu.matmul %176, %177, %cst_14 {dimension_numbers = #tpu.dot_dimension_numbers<[1], [0], [0], [1], [0, 0, 1, 1], [], []>} : vector<8x32xbf16>, vector<32x128xbf16>, vector<8x128xf32> -> vector<8x128xf32>
    %179 = vector.broadcast %175 : vector<1x128xf32> to vector<8x128xf32>
    %180 = arith.addf %178, %179 : vector<8x128xf32>
    %c0_15 = arith.constant 0 : index
    %c0_16 = arith.constant 0 : index
    %181 = vector.load %arg6[%c0_15, %c0_16] : memref<8x128xf32, #tpu.memory_space<vmem>>, vector<8x128xf32>
    tpu.vector_store %arg6[%c0_15, %c0_16], %180 {strides = array<i32>} : memref<8x128xf32, #tpu.memory_space<vmem>>, vector<8x128xf32>,
    return
  }
  func.func @transform_0(%arg0: i32) -> (i32, i32) {
    %c0_i32 = arith.constant 0 : i32
    %c0_i32_0 = arith.constant 0 : i32
    return %arg0, %c0_i32 : i32, i32
  }
  func.func @transform_1(%arg0: i32) -> (i32, i32) {
    %c0_i32 = arith.constant 0 : i32
    %c0_i32_0 = arith.constant 0 : i32
    %c0_i32_1 = arith.constant 0 : i32
    return %c0_i32, %c0_i32_0 : i32, i32
  }
  func.func @transform_2(%arg0: i32) -> (i32, i32) {
    %c0_i32 = arith.constant 0 : i32
    %c0_i32_0 = arith.constant 0 : i32
    %c0_i32_1 = arith.constant 0 : i32
    return %c0_i32, %c0_i32_0 : i32, i32
  }
  func.func @transform_3(%arg0: i32) -> (i32, i32) {
    %c0_i32 = arith.constant 0 : i32
    %c0_i32_0 = arith.constant 0 : i32
    %c0_i32_1 = arith.constant 0 : i32
    return %c0_i32, %c0_i32_0 : i32, i32
  }
  func.func @transform_4(%arg0: i32) -> (i32, i32) {
    %c0_i32 = arith.constant 0 : i32
    %c0_i32_0 = arith.constant 0 : i32
    %c0_i32_1 = arith.constant 0 : i32
    return %c0_i32, %c0_i32_0 : i32, i32
  }
  func.func @transform_5(%arg0: i32) -> (i32, i32) {
    %c0_i32 = arith.constant 0 : i32
    %c0_i32_0 = arith.constant 0 : i32
    return %arg0, %c0_i32 : i32, i32
  }
}

</mosaic_0001>

<llo_original>
// kernel: dyn_attention_head.1
$region0: #{dyn_attention_head.1}
  #allocation0 [shape = 'u32[]', space=smem, size = 0x4, offset = 0x4, fixed_abs, tag = 'smem constant byte address 0x4 - core index']
  #allocation1 [shape = 'u32[144,128]{1,0:T(1,128)}', space=vmem, size = 0x12000, scoped, tag = 'internal scratch']
  %s0 = inlined_call_operand.vmem [shape: f32[8,32], index: 0, kind: input, shape index: {}]
  %s1 = inlined_call_operand.vmem [shape: bf16[32,64], index: 1, kind: input, shape index: {}]
  %s2 = inlined_call_operand.vmem [shape: bf16[32,1024], index: 2, kind: input, shape index: {}]
  %s3 = inlined_call_operand.vmem [shape: bf16[32,128], index: 3, kind: input, shape index: {}]
  %s4 = inlined_call_operand.vmem [shape: f32[1,160], index: 4, kind: input, shape index: {}]
  %s5 = inlined_call_operand.vmem [shape: f32[8,128], index: 5, kind: output, shape index: {}]
  %s6 = sld [smem:[#allocation0]]
  $region30: #{dyn_attention_head.1} parent=0
    _
  %s8 = ssub.s32 1, %s6
  %s9 = scalar_select 0, %s8, %s6
  // Predicated region
  $region2: #{dyn_attention_head.1} parent=0 // pred_check
    _
  $region3: #{dyn_attention_head.1} parent=0 // pred_check_branch
    %11 = sbr.rel (0) target = $region5
  $region4: #{dyn_attention_head.1} parent=0 // pred_region
    _
  $region5: #{dyn_attention_head.1} parent=0 // pred_fallthru
    _
  // Predicated region
  $region6: #{dyn_attention_head.1} parent=0 // pred_check
    _
  $region7: #{dyn_attention_head.1} parent=0 // pred_check_branch
    %13 = sbr.rel (0) target = $region9
  $region8: #{dyn_attention_head.1} parent=0 // pred_region
    _
  $region9: #{dyn_attention_head.1} parent=0 // pred_fallthru
    _
  // Predicated region
  $region10: #{dyn_attention_head.1} parent=0 // pred_check
    _
  $region11: #{dyn_attention_head.1} parent=0 // pred_check_branch
    %15 = sbr.rel (0) target = $region13
  $region12: #{dyn_attention_head.1} parent=0 // pred_region
    _
  $region13: #{dyn_attention_head.1} parent=0 // pred_fallthru
    _
  // Predicated region
  $region14: #{dyn_attention_head.1} parent=0 // pred_check
    _
  $region15: #{dyn_attention_head.1} parent=0 // pred_check_branch
    %17 = sbr.rel (0) target = $region17
  $region16: #{dyn_attention_head.1} parent=0 // pred_region
    _
  $region17: #{dyn_attention_head.1} parent=0 // pred_fallthru
    _
  // Predicated region
  $region18: #{dyn_attention_head.1} parent=0 // pred_check
    _
  $region19: #{dyn_attention_head.1} parent=0 // pred_check_branch
    %19 = sbr.rel (0) target = $region21
  $region20: #{dyn_attention_head.1} parent=0 // pred_region
    _
  $region21: #{dyn_attention_head.1} parent=0 // pred_fallthru
    _
  %v21 = vld [vmem:[%s0] sm:$0xff]
  %v22 = vpack.c.bf16 %v21, %v21
  %v23 = vld [vmem:[%s1] sm:$0xf]
  %v24 = vld [vmem:[%s1 + $0x4] sm:$0xf]
  %v25 = vld [vmem:[%s1 + $0x8] sm:$0xf]
  %v26 = vld [vmem:[%s1 + $0xc] sm:$0xf]
  %v31 = vunpack.c.l.b16 %v23
  %v32 = vunpack.c.l.b16 %v24
  %v33 = vunpack.c.l.b16 %v25
  %v34 = vunpack.c.l.b16 %v26
  %v35 = vpack.c.b16 %v32, %v31
  %v36 = vpack.c.b16 %v34, %v33
  %vm39 = vcmask 261120
  %v41 = vsel %vm39, %v22, 0
  %43 = vmatprep.subr.bf16.mxu0 0
  %44 = vmatpush1.bf16.msra.mxu0 %v35
  %45 = vmatprep.subr.bf16.mxu0 0
  %46 = vmatpush1.bf16.msra.mxu0 %v36
  %47 = vmatprep.subr.bf16.mxu0 0
  %48 = vmatpush1.bf16.msra.mxu0 0
  %49 = vmatprep.subr.bf16.mxu0 0
  %50 = vmatpush1.bf16.msra.mxu0 0
  %51 = vmatprep.subr.bf16.mxu0 0
  %52 = vmatpush1.bf16.msra.mxu0 0
  %53 = vmatprep.subr.bf16.mxu0 0
  %54 = vmatpush1.bf16.msra.mxu0 0
  %55 = vmatprep.subr.bf16.mxu0 0
  %56 = vmatpush1.bf16.msra.mxu0 0
  %57 = vmatprep.subr.bf16.mxu0 0
  %58 = vmatpush1.bf16.msra.mxu0 0
  %59 = vmatprep.subr.bf16.mxu0 0
  %60 = vmatpush1.bf16.msra.mxu0 0
  %61 = vmatprep.subr.bf16.mxu0 0
  %62 = vmatpush1.bf16.msra.mxu0 0
  %63 = vmatprep.subr.bf16.mxu0 0
  %64 = vmatpush1.bf16.msra.mxu0 0
  %65 = vmatprep.subr.bf16.mxu0 0
  %66 = vmatpush1.bf16.msra.mxu0 0
  %67 = vmatprep.subr.bf16.mxu0 0
  %68 = vmatpush1.bf16.msra.mxu0 0
  %69 = vmatprep.subr.bf16.mxu0 0
  %70 = vmatpush1.bf16.msra.mxu0 0
  %71 = vmatprep.subr.bf16.mxu0 0
  %72 = vmatpush1.bf16.msra.mxu0 0
  %73 = vmatprep.subr.bf16.mxu0 0
  %74 = vmatpush1.bf16.msra.mxu0 0
  %75 = vmatprep.mubr.bf16.mxu0 0
  %76 = vmatmul.mubr.bf16.gmra.mrb[0].mxu0 %v41
  %v77 = vpop.f32.mrb[0].mxu0
  %v78 = vadd.f32 0.0, %v77
  %v79 = vpop.f32.mrb[0].mxu0
  %v80 = vpop.f32.mrb[0].mxu0
  %v81 = vpop.f32.mrb[0].mxu0
  %82 = vdwg.mxu0
  %v83 = vld [vmem:[%s4 + $0x1] sm:$0x1]
  %v85 = vlaneseq
  %v86 = vshrl.u32 %v85, 7
  %v87 = vsub.s32 0, %v86
  %v88 = vrot.slane %v83, %v87
  %v90 = vadd.f32 %v78, %v88
  %v91 = vmax.f32 %v90, 0.0
  %v92 = vld [vmem:[%s2] sm:$0xff]
  %v93 = vld [vmem:[%s2 + $0x8] sm:$0xff]
  %v94 = vld [vmem:[%s2 + $0x20] sm:$0xff]
  %v95 = vld [vmem:[%s2 + $0x28] sm:$0xff]
  %v96 = vld [vmem:[%s2 + $0x40] sm:$0xff]
  %v97 = vld [vmem:[%s2 + $0x48] sm:$0xff]
  %v98 = vld [vmem:[%s2 + $0x60] sm:$0xff]
  %v99 = vld [vmem:[%s2 + $0x68] sm:$0xff]
  %v108 = vunpack.c.l.b16 %v92
  %v109 = vunpack.c.h.b16 %v92
  %v110 = vunpack.c.l.b16 %v93
  %v111 = vunpack.c.h.b16 %v93
  %v112 = vunpack.c.l.b16 %v94
  %v113 = vunpack.c.h.b16 %v94
  %v114 = vunpack.c.l.b16 %v95
  %v115 = vunpack.c.h.b16 %v95
  %v116 = vunpack.c.l.b16 %v96
  %v117 = vunpack.c.h.b16 %v96
  %v118 = vunpack.c.l.b16 %v97
  %v119 = vunpack.c.h.b16 %v97
  %v120 = vunpack.c.l.b16 %v98
  %v121 = vunpack.c.h.b16 %v98
  %v122 = vunpack.c.l.b16 %v99
  %v123 = vunpack.c.h.b16 %v99
  %v124 = vpack.c.b16 %v112, %v108
  %v125 = vpack.c.b16 %v113, %v109
  %v126 = vpack.c.b16 %v114, %v110
  %v127 = vpack.c.b16 %v115, %v111
  %v128 = vpack.c.b16 %v120, %v116
  %v129 = vpack.c.b16 %v121, %v117
  %v130 = vpack.c.b16 %v122, %v118
  %v131 = vpack.c.b16 %v123, %v119
  %140 = vmatprep.subr.bf16.mxu0 %v125
  %141 = vmatpush1.bf16.msra.mxu0 %v124
  %142 = vmatprep.subr.bf16.mxu0 %v129
  %143 = vmatpush1.bf16.msra.mxu0 %v128
  %144 = vmatprep.subr.bf16.mxu0 0
  %145 = vmatpush1.bf16.msra.mxu0 0
  %146 = vmatprep.subr.bf16.mxu0 0
  %147 = vmatpush1.bf16.msra.mxu0 0
  %148 = vmatprep.subr.bf16.mxu0 0
  %149 = vmatpush1.bf16.msra.mxu0 0
  %150 = vmatprep.subr.bf16.mxu0 0
  %151 = vmatpush1.bf16.msra.mxu0 0
  %152 = vmatprep.subr.bf16.mxu0 0
  %153 = vmatpush1.bf16.msra.mxu0 0
  %154 = vmatprep.subr.bf16.mxu0 0
  %155 = vmatpush1.bf16.msra.mxu0 0
  %156 = vmatprep.subr.bf16.mxu0 0
  %157 = vmatpush1.bf16.msra.mxu0 0
  %158 = vmatprep.subr.bf16.mxu0 0
  %159 = vmatpush1.bf16.msra.mxu0 0
  %160 = vmatprep.subr.bf16.mxu0 0
  %161 = vmatpush1.bf16.msra.mxu0 0
  %162 = vmatprep.subr.bf16.mxu0 0
  %163 = vmatpush1.bf16.msra.mxu0 0
  %164 = vmatprep.subr.bf16.mxu0 0
  %165 = vmatpush1.bf16.msra.mxu0 0
  %166 = vmatprep.subr.bf16.mxu0 0
  %167 = vmatpush1.bf16.msra.mxu0 0
  %168 = vmatprep.subr.bf16.mxu0 0
  %169 = vmatpush1.bf16.msra.mxu0 0
  %170 = vmatprep.subr.bf16.mxu0 0
  %171 = vmatpush1.bf16.msra.mxu0 0
  %172 = vmatprep.mubr.bf16.mxu0 0
  %173 = vmatmul.mubr.bf16.gmra.mrb[0].mxu0 %v41
  %v174 = vpop.f32.mrb[0].mxu0
  %v175 = vadd.f32 0.0, %v174
  %v176 = vpop.f32.mrb[0].mxu0
  %v177 = vadd.f32 0.0, %v176
  %v178 = vpop.f32.mrb[0].mxu0
  %v179 = vpop.f32.mrb[0].mxu0
  %180 = vdwg.mxu0
  %181 = vmatprep.subr.bf16.mxu0 %v127
  %182 = vmatpush1.bf16.msra.mxu0 %v126
  %183 = vmatprep.subr.bf16.mxu0 %v131
  %184 = vmatpush1.bf16.msra.mxu0 %v130
  %185 = vmatprep.subr.bf16.mxu0 0
  %186 = vmatpush1.bf16.msra.mxu0 0
  %187 = vmatprep.subr.bf16.mxu0 0
  %188 = vmatpush1.bf16.msra.mxu0 0
  %189 = vmatprep.subr.bf16.mxu0 0
  %190 = vmatpush1.bf16.msra.mxu0 0
  %191 = vmatprep.subr.bf16.mxu0 0
  %192 = vmatpush1.bf16.msra.mxu0 0
  %193 = vmatprep.subr.bf16.mxu0 0
  %194 = vmatpush1.bf16.msra.mxu0 0
  %195 = vmatprep.subr.bf16.mxu0 0
  %196 = vmatpush1.bf16.msra.mxu0 0
  %197 = vmatprep.subr.bf16.mxu0 0
  %198 = vmatpush1.bf16.msra.mxu0 0
  %199 = vmatprep.subr.bf16.mxu0 0
  %200 = vmatpush1.bf16.msra.mxu0 0
  %201 = vmatprep.subr.bf16.mxu0 0
  %202 = vmatpush1.bf16.msra.mxu0 0
  %203 = vmatprep.subr.bf16.mxu0 0
  %204 = vmatpush1.bf16.msra.mxu0 0
  %205 = vmatprep.subr.bf16.mxu0 0
  %206 = vmatpush1.bf16.msra.mxu0 0
  %207 = vmatprep.subr.bf16.mxu0 0
  %208 = vmatpush1.bf16.msra.mxu0 0
  %209 = vmatprep.subr.bf16.mxu0 0
  %210 = vmatpush1.bf16.msra.mxu0 0
  %211 = vmatprep.subr.bf16.mxu0 0
  %212 = vmatpush1.bf16.msra.mxu0 0
  %213 = vmatprep.mubr.bf16.mxu0 0
  %214 = vmatmul.mubr.bf16.gmra.mrb[0].mxu0 %v41
  %v215 = vpop.f32.mrb[0].mxu0
  %v216 = vadd.f32 0.0, %v215
  %v217 = vpop.f32.mrb[0].mxu0
  %v218 = vadd.f32 0.0, %v217
  %v219 = vpop.f32.mrb[0].mxu0
  %v220 = vpop.f32.mrb[0].mxu0
  %221 = vdwg.mxu0
  %223 = vset.pattern.permute.xlu0 0
  %224 = vperm.xlu0 %223, %v91
  %v225 = vpop.permute.xlu0 %224
  %v227 = vmul.f32 %v225, %v175
  %229 = vrot.lane.b32.xlu0 %v227, 32
  %v230 = vpop.permute.xlu0 %229
  %v232 = vadd.f32 %v78, %v230
  %233 = vset.pattern.permute.xlu0 1
  %234 = vperm.xlu0 %233, %v91
  %v235 = vpop.permute.xlu0 %234
  %v237 = vmul.f32 %v235, %v175
  %v238 = vadd.f32 %v232, %v237
  %239 = vset.pattern.permute.xlu0 2
  %240 = vperm.xlu0 %239, %v91
  %v241 = vpop.permute.xlu0 %240
  %v243 = vmul.f32 %v241, %v175
  %245 = vrot.lane.b32.xlu0 %v243, 96
  %v246 = vpop.permute.xlu0 %245
  %v248 = vadd.f32 %v238, %v246
  %249 = vset.pattern.permute.xlu0 3
  %250 = vperm.xlu0 %249, %v91
  %v251 = vpop.permute.xlu0 %250
  %v253 = vmul.f32 %v251, %v175
  %255 = vrot.lane.b32.xlu0 %v253, 64
  %v256 = vpop.permute.xlu0 %255
  %v258 = vadd.f32 %v248, %v256
  %259 = vset.pattern.permute.xlu0 4
  %260 = vperm.xlu0 %259, %v91
  %v261 = vpop.permute.xlu0 %260
  %v263 = vmul.f32 %v261, %v177
  %265 = vrot.lane.b32.xlu0 %v263, 32
  %v266 = vpop.permute.xlu0 %265
  %v268 = vadd.f32 %v258, %v266
  %269 = vset.pattern.permute.xlu0 5
  %270 = vperm.xlu0 %269, %v91
  %v271 = vpop.permute.xlu0 %270
  %v273 = vmul.f32 %v271, %v177
  %v274 = vadd.f32 %v268, %v273
  %275 = vset.pattern.permute.xlu0 6
  %276 = vperm.xlu0 %275, %v91
  %v277 = vpop.permute.xlu0 %276
  %v279 = vmul.f32 %v277, %v177
  %281 = vrot.lane.b32.xlu0 %v279, 96
  %v282 = vpop.permute.xlu0 %281
  %v284 = vadd.f32 %v274, %v282
  %285 = vset.pattern.permute.xlu0 7
  %286 = vperm.xlu0 %285, %v91
  %v287 = vpop.permute.xlu0 %286
  %v289 = vmul.f32 %v287, %v177
  %291 = vrot.lane.b32.xlu0 %v289, 64
  %v292 = vpop.permute.xlu0 %291
  %v294 = vadd.f32 %v284, %v292
  %295 = vset.pattern.permute.xlu0 8
  %296 = vperm.xlu0 %295, %v91
  %v297 = vpop.permute.xlu0 %296
  %v299 = vmul.f32 %v297, %v216
  %301 = vrot.lane.b32.xlu0 %v299, 32
  %v302 = vpop.permute.xlu0 %301
  %v304 = vadd.f32 %v294, %v302
  %305 = vset.pattern.permute.xlu0 9
  %306 = vperm.xlu0 %305, %v91
  %v307 = vpop.permute.xlu0 %306
  %v309 = vmul.f32 %v307, %v216
  %v310 = vadd.f32 %v304, %v309
  %311 = vset.pattern.permute.xlu0 10
  %312 = vperm.xlu0 %311, %v91
  %v313 = vpop.permute.xlu0 %312
  %v315 = vmul.f32 %v313, %v216
  %317 = vrot.lane.b32.xlu0 %v315, 96
  %v318 = vpop.permute.xlu0 %317
  %v320 = vadd.f32 %v310, %v318
  %321 = vset.pattern.permute.xlu0 11
  %322 = vperm.xlu0 %321, %v91
  %v323 = vpop.permute.xlu0 %322
  %v325 = vmul.f32 %v323, %v216
  %327 = vrot.lane.b32.xlu0 %v325, 64
  %v328 = vpop.permute.xlu0 %327
  %v330 = vadd.f32 %v320, %v328
  %331 = vset.pattern.permute.xlu0 12
  %332 = vperm.xlu0 %331, %v91
  %v333 = vpop.permute.xlu0 %332
  %v335 = vmul.f32 %v333, %v218
  %337 = vrot.lane.b32.xlu0 %v335, 32
  %v338 = vpop.permute.xlu0 %337
  %v340 = vadd.f32 %v330, %v338
  %341 = vset.pattern.permute.xlu0 13
  %342 = vperm.xlu0 %341, %v91
  %v343 = vpop.permute.xlu0 %342
  %v345 = vmul.f32 %v343, %v218
  %v346 = vadd.f32 %v340, %v345
  %347 = vset.pattern.permute.xlu0 14
  %348 = vperm.xlu0 %347, %v91
  %v349 = vpop.permute.xlu0 %348
  %v351 = vmul.f32 %v349, %v218
  %353 = vrot.lane.b32.xlu0 %v351, 96
  %v354 = vpop.permute.xlu0 %353
  %v356 = vadd.f32 %v346, %v354
  %357 = vset.pattern.permute.xlu0 15
  %358 = vperm.xlu0 %357, %v91
  %v359 = vpop.permute.xlu0 %358
  %v361 = vmul.f32 %v359, %v218
  %363 = vrot.lane.b32.xlu0 %v361, 64
  %v364 = vpop.permute.xlu0 %363
  %v366 = vadd.f32 %v356, %v364
  %v367 = vld [vmem:[%s2 + $0x10] sm:$0xff]
  %v368 = vld [vmem:[%s2 + $0x18] sm:$0xff]
  %v369 = vld [vmem:[%s2 + $0x30] sm:$0xff]
  %v370 = vld [vmem:[%s2 + $0x38] sm:$0xff]
  %v371 = vld [vmem:[%s2 + $0x50] sm:$0xff]
  %v372 = vld [vmem:[%s2 + $0x58] sm:$0xff]
  %v373 = vld [vmem:[%s2 + $0x70] sm:$0xff]
  %v374 = vld [vmem:[%s2 + $0x78] sm:$0xff]
  %v383 = vunpack.c.l.b16 %v367
  %v384 = vunpack.c.h.b16 %v367
  %v385 = vunpack.c.l.b16 %v368
  %v386 = vunpack.c.h.b16 %v368
  %v387 = vunpack.c.l.b16 %v369
  %v388 = vunpack.c.h.b16 %v369
  %v389 = vunpack.c.l.b16 %v370
  %v390 = vunpack.c.h.b16 %v370
  %v391 = vunpack.c.l.b16 %v371
  %v392 = vunpack.c.h.b16 %v371
  %v393 = vunpack.c.l.b16 %v372
  %v394 = vunpack.c.h.b16 %v372
  %v395 = vunpack.c.l.b16 %v373
  %v396 = vunpack.c.h.b16 %v373
  %v397 = vunpack.c.l.b16 %v374
  %v398 = vunpack.c.h.b16 %v374
  %v399 = vpack.c.b16 %v387, %v383
  %v400 = vpack.c.b16 %v388, %v384
  %v401 = vpack.c.b16 %v389, %v385
  %v402 = vpack.c.b16 %v390, %v386
  %v403 = vpack.c.b16 %v395, %v391
  %v404 = vpack.c.b16 %v396, %v392
  %v405 = vpack.c.b16 %v397, %v393
  %v406 = vpack.c.b16 %v398, %v394
  %415 = vmatprep.subr.bf16.mxu0 %v400
  %416 = vmatpush1.bf16.msra.mxu0 %v399
  %417 = vmatprep.subr.bf16.mxu0 %v404
  %418 = vmatpush1.bf16.msra.mxu0 %v403
  %419 = vmatprep.subr.bf16.mxu0 0
  %420 = vmatpush1.bf16.msra.mxu0 0
  %421 = vmatprep.subr.bf16.mxu0 0
  %422 = vmatpush1.bf16.msra.mxu0 0
  %423 = vmatprep.subr.bf16.mxu0 0
  %424 = vmatpush1.bf16.msra.mxu0 0
  %425 = vmatprep.subr.bf16.mxu0 0
  %426 = vmatpush1.bf16.msra.mxu0 0
  %427 = vmatprep.subr.bf16.mxu0 0
  %428 = vmatpush1.bf16.msra.mxu0 0
  %429 = vmatprep.subr.bf16.mxu0 0
  %430 = vmatpush1.bf16.msra.mxu0 0
  %431 = vmatprep.subr.bf16.mxu0 0
  %432 = vmatpush1.bf16.msra.mxu0 0
  %433 = vmatprep.subr.bf16.mxu0 0
  %434 = vmatpush1.bf16.msra.mxu0 0
  %435 = vmatprep.subr.bf16.mxu0 0
  %436 = vmatpush1.bf16.msra.mxu0 0
  %437 = vmatprep.subr.bf16.mxu0 0
  %438 = vmatpush1.bf16.msra.mxu0 0
  %439 = vmatprep.subr.bf16.mxu0 0
  %440 = vmatpush1.bf16.msra.mxu0 0
  %441 = vmatprep.subr.bf16.mxu0 0
  %442 = vmatpush1.bf16.msra.mxu0 0
  %443 = vmatprep.subr.bf16.mxu0 0
  %444 = vmatpush1.bf16.msra.mxu0 0
  %445 = vmatprep.subr.bf16.mxu0 0
  %446 = vmatpush1.bf16.msra.mxu0 0
  %447 = vmatprep.mubr.bf16.mxu0 0
  %448 = vmatmul.mubr.bf16.gmra.mrb[0].mxu0 %v41
  %v449 = vpop.f32.mrb[0].mxu0
  %v450 = vadd.f32 0.0, %v449
  %v451 = vpop.f32.mrb[0].mxu0
  %v452 = vadd.f32 0.0, %v451
  %v453 = vpop.f32.mrb[0].mxu0
  %v454 = vpop.f32.mrb[0].mxu0
  %455 = vdwg.mxu0
  %456 = vmatprep.subr.bf16.mxu0 %v402
  %457 = vmatpush1.bf16.msra.mxu0 %v401
  %458 = vmatprep.subr.bf16.mxu0 %v406
  %459 = vmatpush1.bf16.msra.mxu0 %v405
  %460 = vmatprep.subr.bf16.mxu0 0
  %461 = vmatpush1.bf16.msra.mxu0 0
  %462 = vmatprep.subr.bf16.mxu0 0
  %463 = vmatpush1.bf16.msra.mxu0 0
  %464 = vmatprep.subr.bf16.mxu0 0
  %465 = vmatpush1.bf16.msra.mxu0 0
  %466 = vmatprep.subr.bf16.mxu0 0
  %467 = vmatpush1.bf16.msra.mxu0 0
  %468 = vmatprep.subr.bf16.mxu0 0
  %469 = vmatpush1.bf16.msra.mxu0 0
  %470 = vmatprep.subr.bf16.mxu0 0
  %471 = vmatpush1.bf16.msra.mxu0 0
  %472 = vmatprep.subr.bf16.mxu0 0
  %473 = vmatpush1.bf16.msra.mxu0 0
  %474 = vmatprep.subr.bf16.mxu0 0
  %475 = vmatpush1.bf16.msra.mxu0 0
  %476 = vmatprep.subr.bf16.mxu0 0
  %477 = vmatpush1.bf16.msra.mxu0 0
  %478 = vmatprep.subr.bf16.mxu0 0
  %479 = vmatpush1.bf16.msra.mxu0 0
  %480 = vmatprep.subr.bf16.mxu0 0
  %481 = vmatpush1.bf16.msra.mxu0 0
  %482 = vmatprep.subr.bf16.mxu0 0
  %483 = vmatpush1.bf16.msra.mxu0 0
  %484 = vmatprep.subr.bf16.mxu0 0
  %485 = vmatpush1.bf16.msra.mxu0 0
  %486 = vmatprep.subr.bf16.mxu0 0
  %487 = vmatpush1.bf16.msra.mxu0 0
  %488 = vmatprep.mubr.bf16.mxu0 0
  %489 = vmatmul.mubr.bf16.gmra.mrb[0].mxu0 %v41
  %v490 = vpop.f32.mrb[0].mxu0
  %v491 = vadd.f32 0.0, %v490
  %v492 = vpop.f32.mrb[0].mxu0
  %v493 = vadd.f32 0.0, %v492
  %v494 = vpop.f32.mrb[0].mxu0
  %v495 = vpop.f32.mrb[0].mxu0
  %496 = vdwg.mxu0
  %497 = vset.pattern.permute.xlu0 16
  %498 = vperm.xlu0 %497, %v91
  %v499 = vpop.permute.xlu0 %498
  %v501 = vmul.f32 %v499, %v450
  %503 = vrot.lane.b32.xlu0 %v501, 32
  %v504 = vpop.permute.xlu0 %503
  %v506 = vadd.f32 %v366, %v504
  %507 = vset.pattern.permute.xlu0 17
  %508 = vperm.xlu0 %507, %v91
  %v509 = vpop.permute.xlu0 %508
  %v511 = vmul.f32 %v509, %v450
  %v512 = vadd.f32 %v506, %v511
  %513 = vset.pattern.permute.xlu0 18
  %514 = vperm.xlu0 %513, %v91
  %v515 = vpop.permute.xlu0 %514
  %v517 = vmul.f32 %v515, %v450
  %519 = vrot.lane.b32.xlu0 %v517, 96
  %v520 = vpop.permute.xlu0 %519
  %v522 = vadd.f32 %v512, %v520
  %523 = vset.pattern.permute.xlu0 19
  %524 = vperm.xlu0 %523, %v91
  %v525 = vpop.permute.xlu0 %524
  %v527 = vmul.f32 %v525, %v450
  %529 = vrot.lane.b32.xlu0 %v527, 64
  %v530 = vpop.permute.xlu0 %529
  %v532 = vadd.f32 %v522, %v530
  %533 = vset.pattern.permute.xlu0 20
  %534 = vperm.xlu0 %533, %v91
  %v535 = vpop.permute.xlu0 %534
  %v537 = vmul.f32 %v535, %v452
  %539 = vrot.lane.b32.xlu0 %v537, 32
  %v540 = vpop.permute.xlu0 %539
  %v542 = vadd.f32 %v532, %v540
  %543 = vset.pattern.permute.xlu0 21
  %544 = vperm.xlu0 %543, %v91
  %v545 = vpop.permute.xlu0 %544
  %v547 = vmul.f32 %v545, %v452
  %v548 = vadd.f32 %v542, %v547
  %549 = vset.pattern.permute.xlu0 22
  %550 = vperm.xlu0 %549, %v91
  %v551 = vpop.permute.xlu0 %550
  %v553 = vmul.f32 %v551, %v452
  %555 = vrot.lane.b32.xlu0 %v553, 96
  %v556 = vpop.permute.xlu0 %555
  %v558 = vadd.f32 %v548, %v556
  %559 = vset.pattern.permute.xlu0 23
  %560 = vperm.xlu0 %559, %v91
  %v561 = vpop.permute.xlu0 %560
  %v563 = vmul.f32 %v561, %v452
  %565 = vrot.lane.b32.xlu0 %v563, 64
  %v566 = vpop.permute.xlu0 %565
  %v568 = vadd.f32 %v558, %v566
  %569 = vset.pattern.permute.xlu0 24
  %570 = vperm.xlu0 %569, %v91
  %v571 = vpop.permute.xlu0 %570
  %v573 = vmul.f32 %v571, %v491
  %575 = vrot.lane.b32.xlu0 %v573, 32
  %v576 = vpop.permute.xlu0 %575
  %v578 = vadd.f32 %v568, %v576
  %579 = vset.pattern.permute.xlu0 25
  %580 = vperm.xlu0 %579, %v91
  %v581 = vpop.permute.xlu0 %580
  %v583 = vmul.f32 %v581, %v491
  %v584 = vadd.f32 %v578, %v583
  %585 = vset.pattern.permute.xlu0 26
  %586 = vperm.xlu0 %585, %v91
  %v587 = vpop.permute.xlu0 %586
  %v589 = vmul.f32 %v587, %v491
  %591 = vrot.lane.b32.xlu0 %v589, 96
  %v592 = vpop.permute.xlu0 %591
  %v594 = vadd.f32 %v584, %v592
  %595 = vset.pattern.permute.xlu0 27
  %596 = vperm.xlu0 %595, %v91
  %v597 = vpop.permute.xlu0 %596
  %v599 = vmul.f32 %v597, %v491
  %601 = vrot.lane.b32.xlu0 %v599, 64
  %v602 = vpop.permute.xlu0 %601
  %v604 = vadd.f32 %v594, %v602
  %605 = vset.pattern.permute.xlu0 28
  %606 = vperm.xlu0 %605, %v91
  %v607 = vpop.permute.xlu0 %606
  %v609 = vmul.f32 %v607, %v493
  %611 = vrot.lane.b32.xlu0 %v609, 32
  %v612 = vpop.permute.xlu0 %611
  %v614 = vadd.f32 %v604, %v612
  %615 = vset.pattern.permute.xlu0 29
  %616 = vperm.xlu0 %615, %v91
  %v617 = vpop.permute.xlu0 %616
  %v619 = vmul.f32 %v617, %v493
  %v620 = vadd.f32 %v614, %v619
  %621 = vset.pattern.permute.xlu0 30
  %622 = vperm.xlu0 %621, %v91
  %v623 = vpop.permute.xlu0 %622
  %v625 = vmul.f32 %v623, %v493
  %627 = vrot.lane.b32.xlu0 %v625, 96
  %v628 = vpop.permute.xlu0 %627
  %v630 = vadd.f32 %v620, %v628
  %631 = vset.pattern.permute.xlu0 31
  %632 = vperm.xlu0 %631, %v91
  %v633 = vpop.permute.xlu0 %632
  %v635 = vmul.f32 %v633, %v493
  %637 = vrot.lane.b32.xlu0 %v635, 64
  %v638 = vpop.permute.xlu0 %637
  %v640 = vadd.f32 %v630, %v638
  %v641 = vld [vmem:[%s4] sm:$0x1]
  %v642 = vpack.c.bf16 %v640, %v640
  %v643 = vld [vmem:[%s3] sm:$0xf]
  %v644 = vld [vmem:[%s3 + $0x4] sm:$0xf]
  %v645 = vld [vmem:[%s3 + $0x8] sm:$0xf]
  %v646 = vld [vmem:[%s3 + $0xc] sm:$0xf]
  %v648 = vlaneseq
  %v649 = vshrl.u32 %v648, 7
  %v650 = vsub.s32 0, %v649
  %v651 = vrot.slane %v641, %v650
  %654 = vrot.lane.b32.xlu0 %v642, 96
  %v655 = vpop.permute.xlu0 %654
  %v660 = vunpack.c.l.b16 %v643
  %v661 = vunpack.c.l.b16 %v644
  %v662 = vunpack.c.l.b16 %v645
  %v663 = vunpack.c.l.b16 %v646
  %v664 = vpack.c.b16 %v661, %v660
  %v665 = vpack.c.b16 %v663, %v662
  %v669 = vsel %vm39, %v655, 0
  %671 = vmatprep.subr.bf16.mxu0 0
  %672 = vmatpush1.bf16.msra.mxu0 %v664
  %673 = vmatprep.subr.bf16.mxu0 0
  %674 = vmatpush1.bf16.msra.mxu0 %v665
  %675 = vmatprep.subr.bf16.mxu0 0
  %676 = vmatpush1.bf16.msra.mxu0 0
  %677 = vmatprep.subr.bf16.mxu0 0
  %678 = vmatpush1.bf16.msra.mxu0 0
  %679 = vmatprep.subr.bf16.mxu0 0
  %680 = vmatpush1.bf16.msra.mxu0 0
  %681 = vmatprep.subr.bf16.mxu0 0
  %682 = vmatpush1.bf16.msra.mxu0 0
  %683 = vmatprep.subr.bf16.mxu0 0
  %684 = vmatpush1.bf16.msra.mxu0 0
  %685 = vmatprep.subr.bf16.mxu0 0
  %686 = vmatpush1.bf16.msra.mxu0 0
  %687 = vmatprep.subr.bf16.mxu0 0
  %688 = vmatpush1.bf16.msra.mxu0 0
  %689 = vmatprep.subr.bf16.mxu0 0
  %690 = vmatpush1.bf16.msra.mxu0 0
  %691 = vmatprep.subr.bf16.mxu0 0
  %692 = vmatpush1.bf16.msra.mxu0 0
  %693 = vmatprep.subr.bf16.mxu0 0
  %694 = vmatpush1.bf16.msra.mxu0 0
  %695 = vmatprep.subr.bf16.mxu0 0
  %696 = vmatpush1.bf16.msra.mxu0 0
  %697 = vmatprep.subr.bf16.mxu0 0
  %698 = vmatpush1.bf16.msra.mxu0 0
  %699 = vmatprep.subr.bf16.mxu0 0
  %700 = vmatpush1.bf16.msra.mxu0 0
  %701 = vmatprep.subr.bf16.mxu0 0
  %702 = vmatpush1.bf16.msra.mxu0 0
  %703 = vmatprep.mubr.bf16.mxu0 0
  %704 = vmatmul.mubr.bf16.gmra.mrb[0].mxu0 %v669
  %v705 = vpop.f32.mrb[0].mxu0
  %v706 = vadd.f32 %v651, %v705
  %v707 = vpop.f32.mrb[0].mxu0
  %v708 = vpop.f32.mrb[0].mxu0
  %v709 = vpop.f32.mrb[0].mxu0
  %710 = vdwg.mxu0
  %711 = vst [vmem:[%s5] sm:$0xff] %v706
  // Predicated region
  $region22: #{dyn_attention_head.1} parent=0 // pred_check
    _
  $region23: #{dyn_attention_head.1} parent=0 // pred_check_branch
    %713 = sbr.rel (0) target = $region25
  $region24: #{dyn_attention_head.1} parent=0 // pred_region
    _
  $region25: #{dyn_attention_head.1} parent=0 // pred_fallthru
    _
  // Predicated region
  $region26: #{dyn_attention_head.1} parent=0 // pred_check
    _
  $region27: #{dyn_attention_head.1} parent=0 // pred_check_branch
    %715 = sbr.rel (0) target = $region29
  $region28: #{dyn_attention_head.1} parent=0 // pred_region
    _
  $region29: #{dyn_attention_head.1} parent=0 // pred_fallthru
    _

</llo_original>
